<compile_context>
chip_gen: v7x
topology: tpu7x:2x2x1
jax: 0.10.0
libtpu: 0.0.40
codegen_flags: <defaults>
</compile_context>

<pallas_src>
import functools

import numpy as np
import jax
import jax.numpy as jnp
from jax.experimental import pallas as pl
from jax.experimental.pallas import tpu as pltpu


def _round_up(x, m):
    return ((x + m - 1) // m) * m


def _demand_kernel(stm_ref, oxT_ref, oy_ref, out_ref, *, bin_area, num_types):
    # stm_ref: (W, H)        int8  site-type map (whole grid, shared by all types)
    # oxT_ref: (T, NBXp, W)  f32   per-type x-overlap matrices (pre-transposed)
    # oy_ref:  (T, H, NBYp)  f32   per-type y-overlap matrices
    # out_ref: (T, NBXp, NBYp)     binCapMap (lane-padded)
    stm = stm_ref[...].astype(jnp.int32)          # load + widen once, keep hot
    for t in range(num_types):                    # static unrolled loop, T ~ 5
        mask = (stm == t).astype(jnp.float32)                                 # (W, H)
        tmp = jnp.dot(mask, oy_ref[t], preferred_element_type=jnp.float32)    # (W, NBYp)
        cap = jnp.dot(oxT_ref[t], tmp, preferred_element_type=jnp.float32)    # (NBXp, NBYp)
        out_ref[t] = (bin_area - cap).astype(out_ref.dtype)


def _build_overlap_matrices(site_size_x, site_size_y, num_bins_x, num_bins_y,
                            width, height, W, H):
    """Per-site-type separable overlap matrices, built in kernel-ready layout."""
    binW = width / num_bins_x
    binH = height / num_bins_y
    nbx_p = _round_up(num_bins_x, 8)      # sublane multiple
    nby_p = _round_up(num_bins_y, 128)    # lane multiple (lane-dense stores)

    # oxT[t, i, rw] = len([rw, rw+sx[t]] ∩ [i*binW, (i+1)*binW]) clipped at 0.
    bx = jnp.arange(nbx_p, dtype=jnp.float32)[None, :, None]      # (1, NBXp, 1)
    rw = jnp.arange(W, dtype=jnp.float32)[None, None, :]          # (1, 1, W)
    sx = site_size_x.astype(jnp.float32)[:, None, None]           # (T, 1, 1)
    oxT = jnp.maximum(
        jnp.minimum((bx + 1.0) * binW, rw + sx) - jnp.maximum(bx * binW, rw), 0.0)

    # oy[t, cl, j] = len([cl, cl+sy[t]] ∩ [j*binH, (j+1)*binH]) clipped at 0.
    cl = jnp.arange(H, dtype=jnp.float32)[None, :, None]          # (1, H, 1)
    by = jnp.arange(nby_p, dtype=jnp.float32)[None, None, :]      # (1, 1, NBYp)
    sy = site_size_y.astype(jnp.float32)[:, None, None]           # (T, 1, 1)
    oy = jnp.maximum(
        jnp.minimum((by + 1.0) * binH, cl + sy) - jnp.maximum(by * binH, cl), 0.0)

    # Padded bin rows/cols only feed padded output rows/cols, which are sliced off.
    return oxT, oy, float(binW * binH)


def build_bin_cap_map(site_type_map, site_size_x, site_size_y,
                      num_bins_x, num_bins_y, width, height, overlap_mats=None):
    """Returns binCapMap of shape (numSiteTypes, num_bins_x, num_bins_y)."""
    W, H = site_type_map.shape
    T = int(site_size_x.shape[0])

    if overlap_mats is None:
        overlap_mats = _build_overlap_matrices(
            site_size_x, site_size_y, num_bins_x, num_bins_y, width, height, W, H)
    oxT, oy, bin_area = overlap_mats
    nbx_p = oxT.shape[1]
    nby_p = oy.shape[2]

    stm_i8 = site_type_map.astype(jnp.int8)       # tiny type count -> int8 is exact
    out_dtype = site_size_x.dtype

    kernel = functools.partial(_demand_kernel, bin_area=bin_area, num_types=T)

    bytes_accessed = (W * H * 1
                      + T * nbx_p * W * 4
                      + T * H * nby_p * 4
                      + T * nbx_p * nby_p * 4)
    cost = pl.CostEstimate(
        flops=2 * T * (W * H * nby_p + nbx_p * W * nby_p),
        transcendentals=0,
        bytes_accessed=bytes_accessed)

    # Explicit VMEM budget (double-buffered full-array blocks) — only raise the
    # scoped limit when the default 16 MiB would not be enough.
    vmem_est = 2 * bytes_accessed + (2 << 20)
    compiler_params = None
    if vmem_est > (16 << 20):
        compiler_params = pltpu.CompilerParams(
            vmem_limit_bytes=int(min(vmem_est, 100 << 20)))

    padded = pl.pallas_call(
        kernel,
        out_shape=jax.ShapeDtypeStruct((T, nbx_p, nby_p), out_dtype),
        grid=(1,),
        in_specs=[
            pl.BlockSpec((W, H), lambda i: (0, 0)),
            pl.BlockSpec((T, nbx_p, W), lambda i: (0, 0, 0)),
            pl.BlockSpec((T, H, nby_p), lambda i: (0, 0, 0)),
        ],
        out_specs=pl.BlockSpec((T, nbx_p, nby_p), lambda i: (0, 0, 0)),
        compiler_params=compiler_params,
        cost_estimate=cost,
    )(stm_i8, oxT, oy)

    # Slice off the lane/sublane padding.
    return padded[:, :num_bins_x, :num_bins_y]


class DemandMap:
    """JAX/Pallas port of dreamplacefpga DemandMap (forward only)."""

    def __init__(self, num_bins_x, num_bins_y, width, height,
                 siteType2IndexMap, rsrcType2IndexMap, rsrc2siteMap,
                 rsrc2compId_map, site_type_map, site_size_x, site_size_y):
        self.num_bins_x = num_bins_x
        self.num_bins_y = num_bins_y
        self.width = width
        self.height = height
        self.siteType2IndexMap = siteType2IndexMap
        self.rsrcType2IndexMap = rsrcType2IndexMap
        self.rsrc2siteMap = rsrc2siteMap
        self.rsrc2compId_map = rsrc2compId_map
        self.site_type_map = site_type_map
        self.site_size_x = site_size_x
        self.site_size_y = site_size_y

        # The reference kernel skips site-type 0 (empty); that is reproduced here
        # only because its site sizes are zero (-> zero overlap matrices).
        assert float(site_size_x[0]) == 0.0 and float(site_size_y[0]) == 0.0, \
            "site type 0 must be the empty site (zero size)"

        # Overlap matrices depend only on static config; build once, reuse.
        W, H = site_type_map.shape
        self._overlap_mats = _build_overlap_matrices(
            site_size_x, site_size_y, num_bins_x, num_bins_y, width, height, W, H)

    def forward(self):
        binCapMap = build_bin_cap_map(
            self.site_type_map, self.site_size_x, self.site_size_y,
            self.num_bins_x, self.num_bins_y, self.width, self.height,
            overlap_mats=self._overlap_mats)

        rsrcDemMap = jnp.zeros(
            (len(self.rsrcType2IndexMap), self.num_bins_x, self.num_bins_y),
            dtype=self.site_size_x.dtype)
        for rsrc, rsrcId in self.rsrcType2IndexMap.items():
            compId = self.rsrc2compId_map[rsrcId]
            if compId != -1:
                sId = self.siteType2IndexMap[self.rsrc2siteMap[rsrc]]
                rsrcDemMap = rsrcDemMap.at[compId].set(binCapMap[sId])

        out = []
        for idx in self.rsrc2compId_map:
            if idx != -1:
                out.append(rsrcDemMap[idx])
        return out, binCapMap


def reference_bin_cap(stm, sx, sy, nbx, nby, width, height):
    """Pure-numpy re-implementation of demandMap_cpp.forward + binArea - cap."""
    stm = np.asarray(stm)
    sx = np.asarray(sx)
    sy = np.asarray(sy)
    T = sx.shape[0]
    binW = width / nbx
    binH = height / nby
    cap = np.zeros((T, nbx, nby), dtype=np.float64)
    Wd, Hd = stm.shape
    for rw in range(Wd):
        for cl in range(Hd):
            idx = int(stm[rw, cl])
            if idx > 0:
                nodeX, nodeY = float(sx[idx]), float(sy[idx])
                col, row = float(rw), float(cl)
                iLo, jLo = int(col / binW), int(row / binH)
                iHi = min(int((col + nodeX) / binW), nbx - 1)
                jHi = min(int((row + nodeY) / binH), nby - 1)
                for i in range(iLo, iHi + 1):
                    w = min((i + 1) * binW, col + nodeX) - max(i * binW, col)
                    for j in range(jLo, jHi + 1):
                        h = min((j + 1) * binH, row + nodeY) - max(j * binH, row)
                        cap[idx, i, j] += w * h
    return (binW * binH - cap).astype(np.float32)


if __name__ == "__main__":
    key = jax.random.PRNGKey(0)

    # Small synthetic "placedb"
    W, H = 32, 32                        # site grid (width x height, integer site coords)
    NBX, NBY = 16, 16                    # bins
    width, height = float(W), float(H)   # xh-xl, yh-yl  -> binW = binH = 2.0

    siteType2IndexMap = {"SLICE": 1, "DSP": 2, "BRAM": 3, "IO": 4}
    rsrcType2IndexMap = {"LUT": 0, "FF": 1, "DSP": 2, "BRAM": 3, "IO": 4}
    rsrc2siteMap = {"LUT": "SLICE", "FF": "SLICE", "DSP": "DSP", "BRAM": "BRAM", "IO": "IO"}
    rsrc2compId_map = [0, 1, 2, 3, -1]         # IO has no density/demand map
    numSiteTypes = len(siteType2IndexMap) + 1  # 5 (index 0 = empty site)

    site_type_map = jax.random.randint(key, (W, H), 0, numSiteTypes, dtype=jnp.int32)
    # site sizes per site-type index (index 0 = empty -> size 0)
    site_size_x = jnp.array([0.0, 1.0, 1.0, 1.0, 1.0], dtype=jnp.float32)
    site_size_y = jnp.array([0.0, 1.0, 2.5, 5.0, 1.0], dtype=jnp.float32)

    dm = DemandMap(NBX, NBY, width, height,
                   siteType2IndexMap, rsrcType2IndexMap, rsrc2siteMap,
                   rsrc2compId_map, site_type_map, site_size_x, site_size_y)

    out_list, binCapMap = dm.forward()
    binCapMap = jax.block_until_ready(binCapMap)
    out_list = [jax.block_until_ready(o) for o in out_list]

    # Correctness check against a direct port of the C++ scatter kernel.
    ref_cap = reference_bin_cap(site_type_map, site_size_x, site_size_y,
                                NBX, NBY, width, height)
    np.testing.assert_allclose(np.asarray(binCapMap), ref_cap, rtol=1e-5, atol=1e-4)

    # Check output list assembly (LUT/FF share the SLICE map, etc.)
    assert len(out_list) == 4
    np.testing.assert_allclose(np.asarray(out_list[0]), ref_cap[1], atol=1e-4)  # LUT
    np.testing.assert_allclose(np.asarray(out_list[1]), ref_cap[1], atol=1e-4)  # FF
    np.testing.assert_allclose(np.asarray(out_list[2]), ref_cap[2], atol=1e-4)  # DSP
    np.testing.assert_allclose(np.asarray(out_list[3]), ref_cap[3], atol=1e-4)  # BRAM

    print("KERNEL_OK")
</pallas_src>

<mosaic_0001>
module attributes {stable_mosaic.version = 11 : i64} {
  func.func @_demand_kernel(%arg0: i32, %arg1: memref<32x32xi8, #tpu.memory_space<vmem>>, %arg2: memref<5x16x32xf32, #tpu.memory_space<vmem>>, %arg3: memref<5x32x128xf32, #tpu.memory_space<vmem>>, %arg4: memref<5x16x128xf32, #tpu.memory_space<vmem>>) attributes {dimension_semantics = [#tpu.dimension_semantics<arbitrary>], iteration_bounds = array<i64: 1>, scalar_prefetch = 0 : i64, scratch_operands = 0 : i64, tpu.core_type = #tpu.core_type<tc>, window_params = [{pipeline_mode = #tpu.pipeline_mode<synchronous>, transform_indices = @transform_0, window_bounds = array<i64: 32, 32>}, {pipeline_mode = #tpu.pipeline_mode<synchronous>, transform_indices = @transform_1, window_bounds = array<i64: 5, 16, 32>}, {pipeline_mode = #tpu.pipeline_mode<synchronous>, transform_indices = @transform_2, window_bounds = array<i64: 5, 32, 128>}, {pipeline_mode = #tpu.pipeline_mode<synchronous>, transform_indices = @transform_3, window_bounds = array<i64: 5, 16, 128>}]} {
    %c0 = arith.constant 0 : index
    %c0_0 = arith.constant 0 : index
    %0 = vector.load %arg1[%c0, %c0_0] : memref<32x32xi8, #tpu.memory_space<vmem>>, vector<32x32xi8>
    %1 = arith.extsi %0 : vector<32x32xi8> to vector<32x32xi32>
    %c0_i32 = arith.constant 0 : i32
    %2 = vector.broadcast %c0_i32 : i32 to vector<32x32xi32>
    %3 = arith.cmpi eq, %1, %2 : vector<32x32xi32>
    %4 = arith.extui %3 : vector<32x32xi1> to vector<32x32xi32>
    %5 = arith.sitofp %4 : vector<32x32xi32> to vector<32x32xf32>
    %c0_1 = arith.constant 0 : index
    %c0_2 = arith.constant 0 : index
    %c0_3 = arith.constant 0 : index
    %6 = vector.load %arg3[%c0_1, %c0_2, %c0_3] : memref<5x32x128xf32, #tpu.memory_space<vmem>>, vector<1x32x128xf32>
    %7 = vector.shape_cast %6 : vector<1x32x128xf32> to vector<32x128xf32>
    %cst = arith.constant dense<0.000000e+00> : vector<32x128xf32>
    %8 = tpu.matmul %5, %7, %cst {dimension_numbers = #tpu.dot_dimension_numbers<[1], [0], [0], [1], [0, 0, 1, 1], [], []>} : vector<32x32xf32>, vector<32x128xf32>, vector<32x128xf32> -> vector<32x128xf32>
    %c0_4 = arith.constant 0 : index
    %c0_5 = arith.constant 0 : index
    %c0_6 = arith.constant 0 : index
    %9 = vector.load %arg2[%c0_4, %c0_5, %c0_6] : memref<5x16x32xf32, #tpu.memory_space<vmem>>, vector<1x16x32xf32>
    %10 = vector.shape_cast %9 : vector<1x16x32xf32> to vector<16x32xf32>
    %cst_7 = arith.constant dense<0.000000e+00> : vector<16x128xf32>
    %11 = tpu.matmul %10, %8, %cst_7 {dimension_numbers = #tpu.dot_dimension_numbers<[1], [0], [0], [1], [0, 0, 1, 1], [], []>} : vector<16x32xf32>, vector<32x128xf32>, vector<16x128xf32> -> vector<16x128xf32>
    %cst_8 = arith.constant 4.000000e+00 : f32
    %12 = vector.broadcast %cst_8 : f32 to vector<16x128xf32>
    %13 = arith.subf %12, %11 : vector<16x128xf32>
    %c0_9 = arith.constant 0 : index
    %c0_10 = arith.constant 0 : index
    %c0_11 = arith.constant 0 : index
    %14 = vector.load %arg4[%c0_9, %c0_10, %c0_11] : memref<5x16x128xf32, #tpu.memory_space<vmem>>, vector<1x16x128xf32>
    %15 = vector.shape_cast %14 : vector<1x16x128xf32> to vector<16x128xf32>
    %16 = vector.shape_cast %13 : vector<16x128xf32> to vector<1x16x128xf32>
    tpu.vector_store %arg4[%c0_9, %c0_10, %c0_11], %16 {strides = array<i32>} : memref<5x16x128xf32, #tpu.memory_space<vmem>>, vector<1x16x128xf32>,
    %c1_i32 = arith.constant 1 : i32
    %17 = vector.broadcast %c1_i32 : i32 to vector<32x32xi32>
    %18 = arith.cmpi eq, %1, %17 : vector<32x32xi32>
    %19 = arith.extui %18 : vector<32x32xi1> to vector<32x32xi32>
    %20 = arith.sitofp %19 : vector<32x32xi32> to vector<32x32xf32>
    %c1 = arith.constant 1 : index
    %c0_12 = arith.constant 0 : index
    %c0_13 = arith.constant 0 : index
    %21 = vector.load %arg3[%c1, %c0_12, %c0_13] : memref<5x32x128xf32, #tpu.memory_space<vmem>>, vector<1x32x128xf32>
    %22 = vector.shape_cast %21 : vector<1x32x128xf32> to vector<32x128xf32>
    %cst_14 = arith.constant dense<0.000000e+00> : vector<32x128xf32>
    %23 = tpu.matmul %20, %22, %cst_14 {dimension_numbers = #tpu.dot_dimension_numbers<[1], [0], [0], [1], [0, 0, 1, 1], [], []>} : vector<32x32xf32>, vector<32x128xf32>, vector<32x128xf32> -> vector<32x128xf32>
    %c1_15 = arith.constant 1 : index
    %c0_16 = arith.constant 0 : index
    %c0_17 = arith.constant 0 : index
    %24 = vector.load %arg2[%c1_15, %c0_16, %c0_17] : memref<5x16x32xf32, #tpu.memory_space<vmem>>, vector<1x16x32xf32>
    %25 = vector.shape_cast %24 : vector<1x16x32xf32> to vector<16x32xf32>
    %cst_18 = arith.constant dense<0.000000e+00> : vector<16x128xf32>
    %26 = tpu.matmul %25, %23, %cst_18 {dimension_numbers = #tpu.dot_dimension_numbers<[1], [0], [0], [1], [0, 0, 1, 1], [], []>} : vector<16x32xf32>, vector<32x128xf32>, vector<16x128xf32> -> vector<16x128xf32>
    %cst_19 = arith.constant 4.000000e+00 : f32
    %27 = vector.broadcast %cst_19 : f32 to vector<16x128xf32>
    %28 = arith.subf %27, %26 : vector<16x128xf32>
    %c1_20 = arith.constant 1 : index
    %c0_21 = arith.constant 0 : index
    %c0_22 = arith.constant 0 : index
    %29 = vector.load %arg4[%c1_20, %c0_21, %c0_22] : memref<5x16x128xf32, #tpu.memory_space<vmem>>, vector<1x16x128xf32>
    %30 = vector.shape_cast %29 : vector<1x16x128xf32> to vector<16x128xf32>
    %31 = vector.shape_cast %28 : vector<16x128xf32> to vector<1x16x128xf32>
    tpu.vector_store %arg4[%c1_20, %c0_21, %c0_22], %31 {strides = array<i32>} : memref<5x16x128xf32, #tpu.memory_space<vmem>>, vector<1x16x128xf32>,
    %c2_i32 = arith.constant 2 : i32
    %32 = vector.broadcast %c2_i32 : i32 to vector<32x32xi32>
    %33 = arith.cmpi eq, %1, %32 : vector<32x32xi32>
    %34 = arith.extui %33 : vector<32x32xi1> to vector<32x32xi32>
    %35 = arith.sitofp %34 : vector<32x32xi32> to vector<32x32xf32>
    %c2 = arith.constant 2 : index
    %c0_23 = arith.constant 0 : index
    %c0_24 = arith.constant 0 : index
    %36 = vector.load %arg3[%c2, %c0_23, %c0_24] : memref<5x32x128xf32, #tpu.memory_space<vmem>>, vector<1x32x128xf32>
    %37 = vector.shape_cast %36 : vector<1x32x128xf32> to vector<32x128xf32>
    %cst_25 = arith.constant dense<0.000000e+00> : vector<32x128xf32>
    %38 = tpu.matmul %35, %37, %cst_25 {dimension_numbers = #tpu.dot_dimension_numbers<[1], [0], [0], [1], [0, 0, 1, 1], [], []>} : vector<32x32xf32>, vector<32x128xf32>, vector<32x128xf32> -> vector<32x128xf32>
    %c2_26 = arith.constant 2 : index
    %c0_27 = arith.constant 0 : index
    %c0_28 = arith.constant 0 : index
    %39 = vector.load %arg2[%c2_26, %c0_27, %c0_28] : memref<5x16x32xf32, #tpu.memory_space<vmem>>, vector<1x16x32xf32>
    %40 = vector.shape_cast %39 : vector<1x16x32xf32> to vector<16x32xf32>
    %cst_29 = arith.constant dense<0.000000e+00> : vector<16x128xf32>
    %41 = tpu.matmul %40, %38, %cst_29 {dimension_numbers = #tpu.dot_dimension_numbers<[1], [0], [0], [1], [0, 0, 1, 1], [], []>} : vector<16x32xf32>, vector<32x128xf32>, vector<16x128xf32> -> vector<16x128xf32>
    %cst_30 = arith.constant 4.000000e+00 : f32
    %42 = vector.broadcast %cst_30 : f32 to vector<16x128xf32>
    %43 = arith.subf %42, %41 : vector<16x128xf32>
    %c2_31 = arith.constant 2 : index
    %c0_32 = arith.constant 0 : index
    %c0_33 = arith.constant 0 : index
    %44 = vector.load %arg4[%c2_31, %c0_32, %c0_33] : memref<5x16x128xf32, #tpu.memory_space<vmem>>, vector<1x16x128xf32>
    %45 = vector.shape_cast %44 : vector<1x16x128xf32> to vector<16x128xf32>
    %46 = vector.shape_cast %43 : vector<16x128xf32> to vector<1x16x128xf32>
    tpu.vector_store %arg4[%c2_31, %c0_32, %c0_33], %46 {strides = array<i32>} : memref<5x16x128xf32, #tpu.memory_space<vmem>>, vector<1x16x128xf32>,
    %c3_i32 = arith.constant 3 : i32
    %47 = vector.broadcast %c3_i32 : i32 to vector<32x32xi32>
    %48 = arith.cmpi eq, %1, %47 : vector<32x32xi32>
    %49 = arith.extui %48 : vector<32x32xi1> to vector<32x32xi32>
    %50 = arith.sitofp %49 : vector<32x32xi32> to vector<32x32xf32>
    %c3 = arith.constant 3 : index
    %c0_34 = arith.constant 0 : index
    %c0_35 = arith.constant 0 : index
    %51 = vector.load %arg3[%c3, %c0_34, %c0_35] : memref<5x32x128xf32, #tpu.memory_space<vmem>>, vector<1x32x128xf32>
    %52 = vector.shape_cast %51 : vector<1x32x128xf32> to vector<32x128xf32>
    %cst_36 = arith.constant dense<0.000000e+00> : vector<32x128xf32>
    %53 = tpu.matmul %50, %52, %cst_36 {dimension_numbers = #tpu.dot_dimension_numbers<[1], [0], [0], [1], [0, 0, 1, 1], [], []>} : vector<32x32xf32>, vector<32x128xf32>, vector<32x128xf32> -> vector<32x128xf32>
    %c3_37 = arith.constant 3 : index
    %c0_38 = arith.constant 0 : index
    %c0_39 = arith.constant 0 : index
    %54 = vector.load %arg2[%c3_37, %c0_38, %c0_39] : memref<5x16x32xf32, #tpu.memory_space<vmem>>, vector<1x16x32xf32>
    %55 = vector.shape_cast %54 : vector<1x16x32xf32> to vector<16x32xf32>
    %cst_40 = arith.constant dense<0.000000e+00> : vector<16x128xf32>
    %56 = tpu.matmul %55, %53, %cst_40 {dimension_numbers = #tpu.dot_dimension_numbers<[1], [0], [0], [1], [0, 0, 1, 1], [], []>} : vector<16x32xf32>, vector<32x128xf32>, vector<16x128xf32> -> vector<16x128xf32>
    %cst_41 = arith.constant 4.000000e+00 : f32
    %57 = vector.broadcast %cst_41 : f32 to vector<16x128xf32>
    %58 = arith.subf %57, %56 : vector<16x128xf32>
    %c3_42 = arith.constant 3 : index
    %c0_43 = arith.constant 0 : index
    %c0_44 = arith.constant 0 : index
    %59 = vector.load %arg4[%c3_42, %c0_43, %c0_44] : memref<5x16x128xf32, #tpu.memory_space<vmem>>, vector<1x16x128xf32>
    %60 = vector.shape_cast %59 : vector<1x16x128xf32> to vector<16x128xf32>
    %61 = vector.shape_cast %58 : vector<16x128xf32> to vector<1x16x128xf32>
    tpu.vector_store %arg4[%c3_42, %c0_43, %c0_44], %61 {strides = array<i32>} : memref<5x16x128xf32, #tpu.memory_space<vmem>>, vector<1x16x128xf32>,
    %c4_i32 = arith.constant 4 : i32
    %62 = vector.broadcast %c4_i32 : i32 to vector<32x32xi32>
    %63 = arith.cmpi eq, %1, %62 : vector<32x32xi32>
    %64 = arith.extui %63 : vector<32x32xi1> to vector<32x32xi32>
    %65 = arith.sitofp %64 : vector<32x32xi32> to vector<32x32xf32>
    %c4 = arith.constant 4 : index
    %c0_45 = arith.constant 0 : index
    %c0_46 = arith.constant 0 : index
    %66 = vector.load %arg3[%c4, %c0_45, %c0_46] : memref<5x32x128xf32, #tpu.memory_space<vmem>>, vector<1x32x128xf32>
    %67 = vector.shape_cast %66 : vector<1x32x128xf32> to vector<32x128xf32>
    %cst_47 = arith.constant dense<0.000000e+00> : vector<32x128xf32>
    %68 = tpu.matmul %65, %67, %cst_47 {dimension_numbers = #tpu.dot_dimension_numbers<[1], [0], [0], [1], [0, 0, 1, 1], [], []>} : vector<32x32xf32>, vector<32x128xf32>, vector<32x128xf32> -> vector<32x128xf32>
    %c4_48 = arith.constant 4 : index
    %c0_49 = arith.constant 0 : index
    %c0_50 = arith.constant 0 : index
    %69 = vector.load %arg2[%c4_48, %c0_49, %c0_50] : memref<5x16x32xf32, #tpu.memory_space<vmem>>, vector<1x16x32xf32>
    %70 = vector.shape_cast %69 : vector<1x16x32xf32> to vector<16x32xf32>
    %cst_51 = arith.constant dense<0.000000e+00> : vector<16x128xf32>
    %71 = tpu.matmul %70, %68, %cst_51 {dimension_numbers = #tpu.dot_dimension_numbers<[1], [0], [0], [1], [0, 0, 1, 1], [], []>} : vector<16x32xf32>, vector<32x128xf32>, vector<16x128xf32> -> vector<16x128xf32>
    %cst_52 = arith.constant 4.000000e+00 : f32
    %72 = vector.broadcast %cst_52 : f32 to vector<16x128xf32>
    %73 = arith.subf %72, %71 : vector<16x128xf32>
    %c4_53 = arith.constant 4 : index
    %c0_54 = arith.constant 0 : index
    %c0_55 = arith.constant 0 : index
    %74 = vector.load %arg4[%c4_53, %c0_54, %c0_55] : memref<5x16x128xf32, #tpu.memory_space<vmem>>, vector<1x16x128xf32>
    %75 = vector.shape_cast %74 : vector<1x16x128xf32> to vector<16x128xf32>
    %76 = vector.shape_cast %73 : vector<16x128xf32> to vector<1x16x128xf32>
    tpu.vector_store %arg4[%c4_53, %c0_54, %c0_55], %76 {strides = array<i32>} : memref<5x16x128xf32, #tpu.memory_space<vmem>>, vector<1x16x128xf32>,
    return
  }
  func.func @transform_0(%arg0: i32) -> (i32, i32) {
    %c0_i32 = arith.constant 0 : i32
    %c0_i32_0 = arith.constant 0 : i32
    %c0_i32_1 = arith.constant 0 : i32
    return %c0_i32, %c0_i32_0 : i32, i32
  }
  func.func @transform_1(%arg0: i32) -> (i32, i32, i32) {
    %c0_i32 = arith.constant 0 : i32
    %c0_i32_0 = arith.constant 0 : i32
    %c0_i32_1 = arith.constant 0 : i32
    %c0_i32_2 = arith.constant 0 : i32
    return %c0_i32, %c0_i32_0, %c0_i32_1 : i32, i32, i32
  }
  func.func @transform_2(%arg0: i32) -> (i32, i32, i32) {
    %c0_i32 = arith.constant 0 : i32
    %c0_i32_0 = arith.constant 0 : i32
    %c0_i32_1 = arith.constant 0 : i32
    %c0_i32_2 = arith.constant 0 : i32
    return %c0_i32, %c0_i32_0, %c0_i32_1 : i32, i32, i32
  }
  func.func @transform_3(%arg0: i32) -> (i32, i32, i32) {
    %c0_i32 = arith.constant 0 : i32
    %c0_i32_0 = arith.constant 0 : i32
    %c0_i32_1 = arith.constant 0 : i32
    %c0_i32_2 = arith.constant 0 : i32
    return %c0_i32, %c0_i32_0, %c0_i32_1 : i32, i32, i32
  }
}

</mosaic_0001>

<llo_original>
// kernel: tpu_custom_call.1
$region0: #{tpu_custom_call.1}
  #allocation0 [shape = 'u32[]', space=smem, size = 0x4, offset = 0x4, fixed_abs, tag = 'smem constant byte address 0x4 - core index']
  #allocation1 [shape = 'u32[144,128]{1,0:T(1,128)}', space=vmem, size = 0x12000, scoped, tag = 'internal scratch']
  %s0 = inlined_call_operand.hbm [shape: s8[32,32], index: 0, kind: input, shape index: {}]
  %s1 = inlined_call_operand.hbm [shape: f32[5,16,32], index: 1, kind: input, shape index: {}]
  %s2 = inlined_call_operand.hbm [shape: f32[5,32,128], index: 2, kind: input, shape index: {}]
  %s3 = inlined_call_operand.hbm [shape: f32[5,16,128], index: 3, kind: output, shape index: {}]
  %s4 = sld [smem:[#allocation0]]
  $region34: #{tpu_custom_call.1} parent=0
    _
  %s6 = ssub.s32 1, %s4
  %s7 = scalar_select 0, %s6, %s4
  $region1: #{tpu_custom_call.1} parent=0
    #allocation2 [shape = 'u8[4096]{0}', space=vmem, size = 0x1000, scoped, tag = 'input window, operand 0, single buffered']
    #allocation3 [shape = 's32[1]{0}', space=sflag, size = 0x4, scoped, tag = 'scoped memory for tpu_custom_call.1']
    #allocation4 [shape = 's32[1]{0}', space=sflag, size = 0x4, scoped, tag = 'scoped memory for tpu_custom_call.1']
    #allocation5 [shape = 'u8[40960]{0}', space=vmem, size = 0xa000, scoped, tag = 'input window, operand 1, single buffered']
    #allocation6 [shape = 's32[1]{0}', space=sflag, size = 0x4, scoped, tag = 'scoped memory for tpu_custom_call.1']
    #allocation7 [shape = 'u8[81920]{0}', space=vmem, size = 0x14000, scoped, tag = 'input window, operand 2, single buffered']
    #allocation8 [shape = 'u8[40960]{0}', space=vmem, size = 0xa000, scoped, tag = 'output window, operand 0, single buffered']
    %8 = vsyncpa [#allocation3], 0
    %9 = vsyncpa [#allocation6], 0
    %10 = vsyncpa [#allocation4], 0
    // Predicated region
    $region2: #{tpu_custom_call.1} parent=1 // pred_check
      _
    $region3: #{tpu_custom_call.1} parent=1 // pred_check_branch
      %12 = sbr.rel (0) target = $region5
    $region4: #{tpu_custom_call.1} parent=1 // pred_region
      %s14 = ssub.s32 128, 128
      %15 = vsyncadd [#allocation3], %s14
      %s17 = sshll.u32 [#allocation2], 4
      %s18 = int_to_ptr.vmem [resolvable:$true] %s17
      %20 = dma.hbm_to_vmem [thread:$0]  %s0, 128, %s18, [#allocation3]
    $region5: #{tpu_custom_call.1} parent=1 // pred_fallthru
      _
    // Predicated region
    $region6: #{tpu_custom_call.1} parent=1 // pred_check
      _
    $region7: #{tpu_custom_call.1} parent=1 // pred_check_branch
      %22 = sbr.rel (0) target = $region9
    $region8: #{tpu_custom_call.1} parent=1 // pred_region
      %s24 = ssub.s32 1280, 1280
      %25 = vsyncadd [#allocation6], %s24
      %s26 = sshll.u32 [#allocation5], 4
      %s27 = int_to_ptr.vmem [resolvable:$true] %s26
      %32 = dma.hbm_to_vmem [thread:$0]  %s1, 1280, %s27, [#allocation6], 128, 128, 8
    $region9: #{tpu_custom_call.1} parent=1 // pred_fallthru
      _
    // Predicated region
    $region10: #{tpu_custom_call.1} parent=1 // pred_check
      _
    $region11: #{tpu_custom_call.1} parent=1 // pred_check_branch
      %34 = sbr.rel (0) target = $region13
    $region12: #{tpu_custom_call.1} parent=1 // pred_region
      %s36 = ssub.s32 2560, 2560
      %37 = vsyncadd [#allocation6], %s36
      %s38 = sshll.u32 [#allocation7], 4
      %s39 = int_to_ptr.vmem [resolvable:$true] %s38
      %44 = dma.hbm_to_vmem [thread:$0]  %s2, 2560, %s39, [#allocation6], 128, 128, 8
    $region13: #{tpu_custom_call.1} parent=1 // pred_fallthru
      _
    // Predicated region
    $region14: #{tpu_custom_call.1} parent=1 // pred_check
      _
    $region15: #{tpu_custom_call.1} parent=1 // pred_check_branch
      %46 = sbr.rel (0) target = $region17
    $region16: #{tpu_custom_call.1} parent=1 // pred_region
      %47 = dma.done [#allocation3], 128
    $region17: #{tpu_custom_call.1} parent=1 // pred_fallthru
      _
    // Predicated region
    $region18: #{tpu_custom_call.1} parent=1 // pred_check
      _
    $region19: #{tpu_custom_call.1} parent=1 // pred_check_branch
      %49 = sbr.rel (0) target = $region21
    $region20: #{tpu_custom_call.1} parent=1 // pred_region
      %50 = dma.done [#allocation6], 1280
    $region21: #{tpu_custom_call.1} parent=1 // pred_fallthru
      _
    // Predicated region
    $region22: #{tpu_custom_call.1} parent=1 // pred_check
      _
    $region23: #{tpu_custom_call.1} parent=1 // pred_check_branch
      %52 = sbr.rel (0) target = $region25
    $region24: #{tpu_custom_call.1} parent=1 // pred_region
      %53 = dma.done [#allocation6], 2560
    $region25: #{tpu_custom_call.1} parent=1 // pred_fallthru
      _
    %v54 = vld [vmem:[#allocation2] sm:$0xff]
    %v55 = vunpack.c.0.s8 %v54
    %v56 = vunpack.c.1.s8 %v54
    %v57 = vunpack.c.2.s8 %v54
    %v58 = vunpack.c.3.s8 %v54
    %vm59 = vcmp.eq.s32.totalorder %v55, 0
    %vm60 = vcmp.eq.s32.totalorder %v56, 0
    %vm61 = vcmp.eq.s32.totalorder %v57, 0
    %vm62 = vcmp.eq.s32.totalorder %v58, 0
    %v63 = vsel %vm59, 1, 0
    %v64 = vsel %vm60, 1, 0
    %v65 = vsel %vm61, 1, 0
    %v66 = vsel %vm62, 1, 0
    %v67 = vcvt.s32.f32 %v63
    %v68 = vcvt.s32.f32 %v64
    %v69 = vcvt.s32.f32 %v65
    %v70 = vcvt.s32.f32 %v66
    %v71 = vld [vmem:[#allocation7] sm:$0xff]
    %v72 = vld [vmem:[#allocation7 + $0x8] sm:$0xff]
    %v73 = vld [vmem:[#allocation7 + $0x10] sm:$0xff]
    %v74 = vld [vmem:[#allocation7 + $0x18] sm:$0xff]
    %vm75 = vcmask 261120
    %v77 = vsel %vm75, %v67, 0
    %v80 = vsel %vm75, %v68, 0
    %v83 = vsel %vm75, %v69, 0
    %v86 = vsel %vm75, %v70, 0
    %88 = vmatprep.subr.mxu0 0.0
    %89 = vmatpush1.msra.mxu0 %v71
    %90 = vmatprep.subr.mxu0 0.0
    %91 = vmatpush1.msra.mxu0 %v72
    %92 = vmatprep.subr.mxu0 0.0
    %93 = vmatpush1.msra.mxu0 %v73
    %94 = vmatprep.subr.mxu0 0.0
    %95 = vmatpush1.msra.mxu0 %v74
    %96 = vmatprep.subr.mxu0 0.0
    %97 = vmatpush1.msra.mxu0 0.0
    %98 = vmatprep.subr.mxu0 0.0
    %99 = vmatpush1.msra.mxu0 0.0
    %100 = vmatprep.subr.mxu0 0.0
    %101 = vmatpush1.msra.mxu0 0.0
    %102 = vmatprep.subr.mxu0 0.0
    %103 = vmatpush1.msra.mxu0 0.0
    %104 = vmatprep.subr.mxu0 0.0
    %105 = vmatpush1.msra.mxu0 0.0
    %106 = vmatprep.subr.mxu0 0.0
    %107 = vmatpush1.msra.mxu0 0.0
    %108 = vmatprep.subr.mxu0 0.0
    %109 = vmatpush1.msra.mxu0 0.0
    %110 = vmatprep.subr.mxu0 0.0
    %111 = vmatpush1.msra.mxu0 0.0
    %112 = vmatprep.subr.mxu0 0.0
    %113 = vmatpush1.msra.mxu0 0.0
    %114 = vmatprep.subr.mxu0 0.0
    %115 = vmatpush1.msra.mxu0 0.0
    %116 = vmatprep.subr.mxu0 0.0
    %117 = vmatpush1.msra.mxu0 0.0
    %118 = vmatprep.subr.mxu0 0.0
    %119 = vmatpush1.msra.mxu0 0.0
    %120 = vmatprep.subr.mxu0 0.0
    %121 = vmatpush1.msra.mxu0 0.0
    %122 = vmatprep.subr.mxu0 0.0
    %123 = vmatpush1.msra.mxu0 0.0
    %124 = vmatprep.subr.mxu0 0.0
    %125 = vmatpush1.msra.mxu0 0.0
    %126 = vmatprep.subr.mxu0 0.0
    %127 = vmatpush1.msra.mxu0 0.0
    %128 = vmatprep.subr.mxu0 0.0
    %129 = vmatpush1.msra.mxu0 0.0
    %130 = vmatprep.subr.mxu0 0.0
    %131 = vmatpush1.msra.mxu0 0.0
    %132 = vmatprep.subr.mxu0 0.0
    %133 = vmatpush1.msra.mxu0 0.0
    %134 = vmatprep.subr.mxu0 0.0
    %135 = vmatpush1.msra.mxu0 0.0
    %136 = vmatprep.subr.mxu0 0.0
    %137 = vmatpush1.msra.mxu0 0.0
    %138 = vmatprep.subr.mxu0 0.0
    %139 = vmatpush1.msra.mxu0 0.0
    %140 = vmatprep.subr.mxu0 0.0
    %141 = vmatpush1.msra.mxu0 0.0
    %142 = vmatprep.subr.mxu0 0.0
    %143 = vmatpush1.msra.mxu0 0.0
    %144 = vmatprep.subr.mxu0 0.0
    %145 = vmatpush1.msra.mxu0 0.0
    %146 = vmatprep.subr.mxu0 0.0
    %147 = vmatpush1.msra.mxu0 0.0
    %148 = vmatprep.subr.mxu0 0.0
    %149 = vmatpush1.msra.mxu0 0.0
    %150 = vmatprep.subr.mxu0 0.0
    %151 = vmatpush1.msra.mxu0 0.0
    %152 = vmatprep.mubr.f32.mxu0 0.0
    %153 = vmatmul.mubr.f32.gmra.mrb[0].mxu0 %v77
    %v154 = vpop.f32.mrb[0].mxu0
    %v155 = vadd.f32 0.0, %v154
    %v156 = vpop.f32.mrb[0].mxu0
    %157 = vmatprep.mubr.f32.mxu0 0.0
    %158 = vmatmul.mubr.f32.gmra.mrb[0].mxu0 %v80
    %v159 = vpop.f32.mrb[0].mxu0
    %v160 = vadd.f32 0.0, %v159
    %v161 = vpop.f32.mrb[0].mxu0
    %162 = vmatprep.mubr.f32.mxu0 0.0
    %163 = vmatmul.mubr.f32.gmra.mrb[0].mxu0 %v83
    %v164 = vpop.f32.mrb[0].mxu0
    %v165 = vadd.f32 0.0, %v164
    %v166 = vpop.f32.mrb[0].mxu0
    %167 = vmatprep.mubr.f32.mxu0 0.0
    %168 = vmatmul.mubr.f32.gmra.mrb[0].mxu0 %v86
    %v169 = vpop.f32.mrb[0].mxu0
    %v170 = vadd.f32 0.0, %v169
    %v171 = vpop.f32.mrb[0].mxu0
    %172 = vdwg.mxu0
    %v173 = vld [vmem:[#allocation5] sm:$0xff]
    %v174 = vld [vmem:[#allocation5 + $0x8] sm:$0xff]
    %v176 = vsel %vm75, %v173, 0
    %v179 = vsel %vm75, %v174, 0
    %181 = vmatprep.subr.mxu0 0.0
    %182 = vmatpush1.msra.mxu0 %v155
    %183 = vmatprep.subr.mxu0 0.0
    %184 = vmatpush1.msra.mxu0 %v160
    %185 = vmatprep.subr.mxu0 0.0
    %186 = vmatpush1.msra.mxu0 %v165
    %187 = vmatprep.subr.mxu0 0.0
    %188 = vmatpush1.msra.mxu0 %v170
    %189 = vmatprep.subr.mxu0 0.0
    %190 = vmatpush1.msra.mxu0 0.0
    %191 = vmatprep.subr.mxu0 0.0
    %192 = vmatpush1.msra.mxu0 0.0
    %193 = vmatprep.subr.mxu0 0.0
    %194 = vmatpush1.msra.mxu0 0.0
    %195 = vmatprep.subr.mxu0 0.0
    %196 = vmatpush1.msra.mxu0 0.0
    %197 = vmatprep.subr.mxu0 0.0
    %198 = vmatpush1.msra.mxu0 0.0
    %199 = vmatprep.subr.mxu0 0.0
    %200 = vmatpush1.msra.mxu0 0.0
    %201 = vmatprep.subr.mxu0 0.0
    %202 = vmatpush1.msra.mxu0 0.0
    %203 = vmatprep.subr.mxu0 0.0
    %204 = vmatpush1.msra.mxu0 0.0
    %205 = vmatprep.subr.mxu0 0.0
    %206 = vmatpush1.msra.mxu0 0.0
    %207 = vmatprep.subr.mxu0 0.0
    %208 = vmatpush1.msra.mxu0 0.0
    %209 = vmatprep.subr.mxu0 0.0
    %210 = vmatpush1.msra.mxu0 0.0
    %211 = vmatprep.subr.mxu0 0.0
    %212 = vmatpush1.msra.mxu0 0.0
    %213 = vmatprep.subr.mxu0 0.0
    %214 = vmatpush1.msra.mxu0 0.0
    %215 = vmatprep.subr.mxu0 0.0
    %216 = vmatpush1.msra.mxu0 0.0
    %217 = vmatprep.subr.mxu0 0.0
    %218 = vmatpush1.msra.mxu0 0.0
    %219 = vmatprep.subr.mxu0 0.0
    %220 = vmatpush1.msra.mxu0 0.0
    %221 = vmatprep.subr.mxu0 0.0
    %222 = vmatpush1.msra.mxu0 0.0
    %223 = vmatprep.subr.mxu0 0.0
    %224 = vmatpush1.msra.mxu0 0.0
    %225 = vmatprep.subr.mxu0 0.0
    %226 = vmatpush1.msra.mxu0 0.0
    %227 = vmatprep.subr.mxu0 0.0
    %228 = vmatpush1.msra.mxu0 0.0
    %229 = vmatprep.subr.mxu0 0.0
    %230 = vmatpush1.msra.mxu0 0.0
    %231 = vmatprep.subr.mxu0 0.0
    %232 = vmatpush1.msra.mxu0 0.0
    %233 = vmatprep.subr.mxu0 0.0
    %234 = vmatpush1.msra.mxu0 0.0
    %235 = vmatprep.subr.mxu0 0.0
    %236 = vmatpush1.msra.mxu0 0.0
    %237 = vmatprep.subr.mxu0 0.0
    %238 = vmatpush1.msra.mxu0 0.0
    %239 = vmatprep.subr.mxu0 0.0
    %240 = vmatpush1.msra.mxu0 0.0
    %241 = vmatprep.subr.mxu0 0.0
    %242 = vmatpush1.msra.mxu0 0.0
    %243 = vmatprep.subr.mxu0 0.0
    %244 = vmatpush1.msra.mxu0 0.0
    %245 = vmatprep.mubr.f32.mxu0 0.0
    %246 = vmatmul.mubr.f32.gmra.mrb[0].mxu0 %v176
    %v247 = vpop.f32.mrb[0].mxu0
    %v248 = vadd.f32 0.0, %v247
    %v249 = vpop.f32.mrb[0].mxu0
    %250 = vmatprep.mubr.f32.mxu0 0.0
    %251 = vmatmul.mubr.f32.gmra.mrb[0].mxu0 %v179
    %v252 = vpop.f32.mrb[0].mxu0
    %v253 = vadd.f32 0.0, %v252
    %v254 = vpop.f32.mrb[0].mxu0
    %255 = vdwg.mxu0
    %v256 = vsub.f32 4.0, %v248
    %v257 = vsub.f32 4.0, %v253
    %258 = vst [vmem:[#allocation8] sm:$0xff] %v256
    %259 = vst [vmem:[#allocation8 + $0x8] sm:$0xff] %v257
    %vm260 = vcmp.eq.s32.totalorder %v55, 1
    %vm261 = vcmp.eq.s32.totalorder %v56, 1
    %vm262 = vcmp.eq.s32.totalorder %v57, 1
    %vm263 = vcmp.eq.s32.totalorder %v58, 1
    %v264 = vsel %vm260, 1, 0
    %v265 = vsel %vm261, 1, 0
    %v266 = vsel %vm262, 1, 0
    %v267 = vsel %vm263, 1, 0
    %v268 = vcvt.s32.f32 %v264
    %v269 = vcvt.s32.f32 %v265
    %v270 = vcvt.s32.f32 %v266
    %v271 = vcvt.s32.f32 %v267
    %s272 = scalar_lea.vmem [#allocation7], 32
    %v273 = vld [vmem:[%s272] sm:$0xff]
    %v274 = vld [vmem:[%s272 + $0x8] sm:$0xff]
    %v275 = vld [vmem:[%s272 + $0x10] sm:$0xff]
    %v276 = vld [vmem:[%s272 + $0x18] sm:$0xff]
    %v278 = vsel %vm75, %v268, 0
    %v281 = vsel %vm75, %v269, 0
    %v284 = vsel %vm75, %v270, 0
    %v287 = vsel %vm75, %v271, 0
    %289 = vmatprep.subr.mxu0 0.0
    %290 = vmatpush1.msra.mxu0 %v273
    %291 = vmatprep.subr.mxu0 0.0
    %292 = vmatpush1.msra.mxu0 %v274
    %293 = vmatprep.subr.mxu0 0.0
    %294 = vmatpush1.msra.mxu0 %v275
    %295 = vmatprep.subr.mxu0 0.0
    %296 = vmatpush1.msra.mxu0 %v276
    %297 = vmatprep.subr.mxu0 0.0
    %298 = vmatpush1.msra.mxu0 0.0
    %299 = vmatprep.subr.mxu0 0.0
    %300 = vmatpush1.msra.mxu0 0.0
    %301 = vmatprep.subr.mxu0 0.0
    %302 = vmatpush1.msra.mxu0 0.0
    %303 = vmatprep.subr.mxu0 0.0
    %304 = vmatpush1.msra.mxu0 0.0
    %305 = vmatprep.subr.mxu0 0.0
    %306 = vmatpush1.msra.mxu0 0.0
    %307 = vmatprep.subr.mxu0 0.0
    %308 = vmatpush1.msra.mxu0 0.0
    %309 = vmatprep.subr.mxu0 0.0
    %310 = vmatpush1.msra.mxu0 0.0
    %311 = vmatprep.subr.mxu0 0.0
    %312 = vmatpush1.msra.mxu0 0.0
    %313 = vmatprep.subr.mxu0 0.0
    %314 = vmatpush1.msra.mxu0 0.0
    %315 = vmatprep.subr.mxu0 0.0
    %316 = vmatpush1.msra.mxu0 0.0
    %317 = vmatprep.subr.mxu0 0.0
    %318 = vmatpush1.msra.mxu0 0.0
    %319 = vmatprep.subr.mxu0 0.0
    %320 = vmatpush1.msra.mxu0 0.0
    %321 = vmatprep.subr.mxu0 0.0
    %322 = vmatpush1.msra.mxu0 0.0
    %323 = vmatprep.subr.mxu0 0.0
    %324 = vmatpush1.msra.mxu0 0.0
    %325 = vmatprep.subr.mxu0 0.0
    %326 = vmatpush1.msra.mxu0 0.0
    %327 = vmatprep.subr.mxu0 0.0
    %328 = vmatpush1.msra.mxu0 0.0
    %329 = vmatprep.subr.mxu0 0.0
    %330 = vmatpush1.msra.mxu0 0.0
    %331 = vmatprep.subr.mxu0 0.0
    %332 = vmatpush1.msra.mxu0 0.0
    %333 = vmatprep.subr.mxu0 0.0
    %334 = vmatpush1.msra.mxu0 0.0
    %335 = vmatprep.subr.mxu0 0.0
    %336 = vmatpush1.msra.mxu0 0.0
    %337 = vmatprep.subr.mxu0 0.0
    %338 = vmatpush1.msra.mxu0 0.0
    %339 = vmatprep.subr.mxu0 0.0
    %340 = vmatpush1.msra.mxu0 0.0
    %341 = vmatprep.subr.mxu0 0.0
    %342 = vmatpush1.msra.mxu0 0.0
    %343 = vmatprep.subr.mxu0 0.0
    %344 = vmatpush1.msra.mxu0 0.0
    %345 = vmatprep.subr.mxu0 0.0
    %346 = vmatpush1.msra.mxu0 0.0
    %347 = vmatprep.subr.mxu0 0.0
    %348 = vmatpush1.msra.mxu0 0.0
    %349 = vmatprep.subr.mxu0 0.0
    %350 = vmatpush1.msra.mxu0 0.0
    %351 = vmatprep.subr.mxu0 0.0
    %352 = vmatpush1.msra.mxu0 0.0
    %353 = vmatprep.mubr.f32.mxu0 0.0
    %354 = vmatmul.mubr.f32.gmra.mrb[0].mxu0 %v278
    %v355 = vpop.f32.mrb[0].mxu0
    %v356 = vadd.f32 0.0, %v355
    %v357 = vpop.f32.mrb[0].mxu0
    %358 = vmatprep.mubr.f32.mxu0 0.0
    %359 = vmatmul.mubr.f32.gmra.mrb[0].mxu0 %v281
    %v360 = vpop.f32.mrb[0].mxu0
    %v361 = vadd.f32 0.0, %v360
    %v362 = vpop.f32.mrb[0].mxu0
    %363 = vmatprep.mubr.f32.mxu0 0.0
    %364 = vmatmul.mubr.f32.gmra.mrb[0].mxu0 %v284
    %v365 = vpop.f32.mrb[0].mxu0
    %v366 = vadd.f32 0.0, %v365
    %v367 = vpop.f32.mrb[0].mxu0
    %368 = vmatprep.mubr.f32.mxu0 0.0
    %369 = vmatmul.mubr.f32.gmra.mrb[0].mxu0 %v287
    %v370 = vpop.f32.mrb[0].mxu0
    %v371 = vadd.f32 0.0, %v370
    %v372 = vpop.f32.mrb[0].mxu0
    %373 = vdwg.mxu0
    %s374 = scalar_lea.vmem [#allocation5], 16
    %v375 = vld [vmem:[%s374] sm:$0xff]
    %v376 = vld [vmem:[%s374 + $0x8] sm:$0xff]
    %v378 = vsel %vm75, %v375, 0
    %v381 = vsel %vm75, %v376, 0
    %383 = vmatprep.subr.mxu0 0.0
    %384 = vmatpush1.msra.mxu0 %v356
    %385 = vmatprep.subr.mxu0 0.0
    %386 = vmatpush1.msra.mxu0 %v361
    %387 = vmatprep.subr.mxu0 0.0
    %388 = vmatpush1.msra.mxu0 %v366
    %389 = vmatprep.subr.mxu0 0.0
    %390 = vmatpush1.msra.mxu0 %v371
    %391 = vmatprep.subr.mxu0 0.0
    %392 = vmatpush1.msra.mxu0 0.0
    %393 = vmatprep.subr.mxu0 0.0
    %394 = vmatpush1.msra.mxu0 0.0
    %395 = vmatprep.subr.mxu0 0.0
    %396 = vmatpush1.msra.mxu0 0.0
    %397 = vmatprep.subr.mxu0 0.0
    %398 = vmatpush1.msra.mxu0 0.0
    %399 = vmatprep.subr.mxu0 0.0
    %400 = vmatpush1.msra.mxu0 0.0
    %401 = vmatprep.subr.mxu0 0.0
    %402 = vmatpush1.msra.mxu0 0.0
    %403 = vmatprep.subr.mxu0 0.0
    %404 = vmatpush1.msra.mxu0 0.0
    %405 = vmatprep.subr.mxu0 0.0
    %406 = vmatpush1.msra.mxu0 0.0
    %407 = vmatprep.subr.mxu0 0.0
    %408 = vmatpush1.msra.mxu0 0.0
    %409 = vmatprep.subr.mxu0 0.0
    %410 = vmatpush1.msra.mxu0 0.0
    %411 = vmatprep.subr.mxu0 0.0
    %412 = vmatpush1.msra.mxu0 0.0
    %413 = vmatprep.subr.mxu0 0.0
    %414 = vmatpush1.msra.mxu0 0.0
    %415 = vmatprep.subr.mxu0 0.0
    %416 = vmatpush1.msra.mxu0 0.0
    %417 = vmatprep.subr.mxu0 0.0
    %418 = vmatpush1.msra.mxu0 0.0
    %419 = vmatprep.subr.mxu0 0.0
    %420 = vmatpush1.msra.mxu0 0.0
    %421 = vmatprep.subr.mxu0 0.0
    %422 = vmatpush1.msra.mxu0 0.0
    %423 = vmatprep.subr.mxu0 0.0
    %424 = vmatpush1.msra.mxu0 0.0
    %425 = vmatprep.subr.mxu0 0.0
    %426 = vmatpush1.msra.mxu0 0.0
    %427 = vmatprep.subr.mxu0 0.0
    %428 = vmatpush1.msra.mxu0 0.0
    %429 = vmatprep.subr.mxu0 0.0
    %430 = vmatpush1.msra.mxu0 0.0
    %431 = vmatprep.subr.mxu0 0.0
    %432 = vmatpush1.msra.mxu0 0.0
    %433 = vmatprep.subr.mxu0 0.0
    %434 = vmatpush1.msra.mxu0 0.0
    %435 = vmatprep.subr.mxu0 0.0
    %436 = vmatpush1.msra.mxu0 0.0
    %437 = vmatprep.subr.mxu0 0.0
    %438 = vmatpush1.msra.mxu0 0.0
    %439 = vmatprep.subr.mxu0 0.0
    %440 = vmatpush1.msra.mxu0 0.0
    %441 = vmatprep.subr.mxu0 0.0
    %442 = vmatpush1.msra.mxu0 0.0
    %443 = vmatprep.subr.mxu0 0.0
    %444 = vmatpush1.msra.mxu0 0.0
    %445 = vmatprep.subr.mxu0 0.0
    %446 = vmatpush1.msra.mxu0 0.0
    %447 = vmatprep.mubr.f32.mxu0 0.0
    %448 = vmatmul.mubr.f32.gmra.mrb[0].mxu0 %v378
    %v449 = vpop.f32.mrb[0].mxu0
    %v450 = vadd.f32 0.0, %v449
    %v451 = vpop.f32.mrb[0].mxu0
    %452 = vmatprep.mubr.f32.mxu0 0.0
    %453 = vmatmul.mubr.f32.gmra.mrb[0].mxu0 %v381
    %v454 = vpop.f32.mrb[0].mxu0
    %v455 = vadd.f32 0.0, %v454
    %v456 = vpop.f32.mrb[0].mxu0
    %457 = vdwg.mxu0
    %v458 = vsub.f32 4.0, %v450
    %v459 = vsub.f32 4.0, %v455
    %s460 = scalar_lea.vmem [#allocation8], 16
    %461 = vst [vmem:[%s460] sm:$0xff] %v458
    %462 = vst [vmem:[%s460 + $0x8] sm:$0xff] %v459
    %vm463 = vcmp.eq.s32.totalorder %v55, 2
    %vm464 = vcmp.eq.s32.totalorder %v56, 2
    %vm465 = vcmp.eq.s32.totalorder %v57, 2
    %vm466 = vcmp.eq.s32.totalorder %v58, 2
    %v467 = vsel %vm463, 1, 0
    %v468 = vsel %vm464, 1, 0
    %v469 = vsel %vm465, 1, 0
    %v470 = vsel %vm466, 1, 0
    %v471 = vcvt.s32.f32 %v467
    %v472 = vcvt.s32.f32 %v468
    %v473 = vcvt.s32.f32 %v469
    %v474 = vcvt.s32.f32 %v470
    %s475 = scalar_lea.vmem [#allocation7], 64
    %v476 = vld [vmem:[%s475] sm:$0xff]
    %v477 = vld [vmem:[%s475 + $0x8] sm:$0xff]
    %v478 = vld [vmem:[%s475 + $0x10] sm:$0xff]
    %v479 = vld [vmem:[%s475 + $0x18] sm:$0xff]
    %v481 = vsel %vm75, %v471, 0
    %v484 = vsel %vm75, %v472, 0
    %v487 = vsel %vm75, %v473, 0
    %v490 = vsel %vm75, %v474, 0
    %492 = vmatprep.subr.mxu0 0.0
    %493 = vmatpush1.msra.mxu0 %v476
    %494 = vmatprep.subr.mxu0 0.0
    %495 = vmatpush1.msra.mxu0 %v477
    %496 = vmatprep.subr.mxu0 0.0
    %497 = vmatpush1.msra.mxu0 %v478
    %498 = vmatprep.subr.mxu0 0.0
    %499 = vmatpush1.msra.mxu0 %v479
    %500 = vmatprep.subr.mxu0 0.0
    %501 = vmatpush1.msra.mxu0 0.0
    %502 = vmatprep.subr.mxu0 0.0
    %503 = vmatpush1.msra.mxu0 0.0
    %504 = vmatprep.subr.mxu0 0.0
    %505 = vmatpush1.msra.mxu0 0.0
    %506 = vmatprep.subr.mxu0 0.0
    %507 = vmatpush1.msra.mxu0 0.0
    %508 = vmatprep.subr.mxu0 0.0
    %509 = vmatpush1.msra.mxu0 0.0
    %510 = vmatprep.subr.mxu0 0.0
    %511 = vmatpush1.msra.mxu0 0.0
    %512 = vmatprep.subr.mxu0 0.0
    %513 = vmatpush1.msra.mxu0 0.0
    %514 = vmatprep.subr.mxu0 0.0
    %515 = vmatpush1.msra.mxu0 0.0
    %516 = vmatprep.subr.mxu0 0.0
    %517 = vmatpush1.msra.mxu0 0.0
    %518 = vmatprep.subr.mxu0 0.0
    %519 = vmatpush1.msra.mxu0 0.0
    %520 = vmatprep.subr.mxu0 0.0
    %521 = vmatpush1.msra.mxu0 0.0
    %522 = vmatprep.subr.mxu0 0.0
    %523 = vmatpush1.msra.mxu0 0.0
    %524 = vmatprep.subr.mxu0 0.0
    %525 = vmatpush1.msra.mxu0 0.0
    %526 = vmatprep.subr.mxu0 0.0
    %527 = vmatpush1.msra.mxu0 0.0
    %528 = vmatprep.subr.mxu0 0.0
    %529 = vmatpush1.msra.mxu0 0.0
    %530 = vmatprep.subr.mxu0 0.0
    %531 = vmatpush1.msra.mxu0 0.0
    %532 = vmatprep.subr.mxu0 0.0
    %533 = vmatpush1.msra.mxu0 0.0
    %534 = vmatprep.subr.mxu0 0.0
    %535 = vmatpush1.msra.mxu0 0.0
    %536 = vmatprep.subr.mxu0 0.0
    %537 = vmatpush1.msra.mxu0 0.0
    %538 = vmatprep.subr.mxu0 0.0
    %539 = vmatpush1.msra.mxu0 0.0
    %540 = vmatprep.subr.mxu0 0.0
    %541 = vmatpush1.msra.mxu0 0.0
    %542 = vmatprep.subr.mxu0 0.0
    %543 = vmatpush1.msra.mxu0 0.0
    %544 = vmatprep.subr.mxu0 0.0
    %545 = vmatpush1.msra.mxu0 0.0
    %546 = vmatprep.subr.mxu0 0.0
    %547 = vmatpush1.msra.mxu0 0.0
    %548 = vmatprep.subr.mxu0 0.0
    %549 = vmatpush1.msra.mxu0 0.0
    %550 = vmatprep.subr.mxu0 0.0
    %551 = vmatpush1.msra.mxu0 0.0
    %552 = vmatprep.subr.mxu0 0.0
    %553 = vmatpush1.msra.mxu0 0.0
    %554 = vmatprep.subr.mxu0 0.0
    %555 = vmatpush1.msra.mxu0 0.0
    %556 = vmatprep.mubr.f32.mxu0 0.0
    %557 = vmatmul.mubr.f32.gmra.mrb[0].mxu0 %v481
    %v558 = vpop.f32.mrb[0].mxu0
    %v559 = vadd.f32 0.0, %v558
    %v560 = vpop.f32.mrb[0].mxu0
    %561 = vmatprep.mubr.f32.mxu0 0.0
    %562 = vmatmul.mubr.f32.gmra.mrb[0].mxu0 %v484
    %v563 = vpop.f32.mrb[0].mxu0
    %v564 = vadd.f32 0.0, %v563
    %v565 = vpop.f32.mrb[0].mxu0
    %566 = vmatprep.mubr.f32.mxu0 0.0
    %567 = vmatmul.mubr.f32.gmra.mrb[0].mxu0 %v487
    %v568 = vpop.f32.mrb[0].mxu0
    %v569 = vadd.f32 0.0, %v568
    %v570 = vpop.f32.mrb[0].mxu0
    %571 = vmatprep.mubr.f32.mxu0 0.0
    %572 = vmatmul.mubr.f32.gmra.mrb[0].mxu0 %v490
    %v573 = vpop.f32.mrb[0].mxu0
    %v574 = vadd.f32 0.0, %v573
    %v575 = vpop.f32.mrb[0].mxu0
    %576 = vdwg.mxu0
    %s577 = scalar_lea.vmem [#allocation5], 32
    %v578 = vld [vmem:[%s577] sm:$0xff]
    %v579 = vld [vmem:[%s577 + $0x8] sm:$0xff]
    %v581 = vsel %vm75, %v578, 0
    %v584 = vsel %vm75, %v579, 0
    %586 = vmatprep.subr.mxu0 0.0
    %587 = vmatpush1.msra.mxu0 %v559
    %588 = vmatprep.subr.mxu0 0.0
    %589 = vmatpush1.msra.mxu0 %v564
    %590 = vmatprep.subr.mxu0 0.0
    %591 = vmatpush1.msra.mxu0 %v569
    %592 = vmatprep.subr.mxu0 0.0
    %593 = vmatpush1.msra.mxu0 %v574
    %594 = vmatprep.subr.mxu0 0.0
    %595 = vmatpush1.msra.mxu0 0.0
    %596 = vmatprep.subr.mxu0 0.0
    %597 = vmatpush1.msra.mxu0 0.0
    %598 = vmatprep.subr.mxu0 0.0
    %599 = vmatpush1.msra.mxu0 0.0
    %600 = vmatprep.subr.mxu0 0.0
    %601 = vmatpush1.msra.mxu0 0.0
    %602 = vmatprep.subr.mxu0 0.0
    %603 = vmatpush1.msra.mxu0 0.0
    %604 = vmatprep.subr.mxu0 0.0
    %605 = vmatpush1.msra.mxu0 0.0
    %606 = vmatprep.subr.mxu0 0.0
    %607 = vmatpush1.msra.mxu0 0.0
    %608 = vmatprep.subr.mxu0 0.0
    %609 = vmatpush1.msra.mxu0 0.0
    %610 = vmatprep.subr.mxu0 0.0
    %611 = vmatpush1.msra.mxu0 0.0
    %612 = vmatprep.subr.mxu0 0.0
    %613 = vmatpush1.msra.mxu0 0.0
    %614 = vmatprep.subr.mxu0 0.0
    %615 = vmatpush1.msra.mxu0 0.0
    %616 = vmatprep.subr.mxu0 0.0
    %617 = vmatpush1.msra.mxu0 0.0
    %618 = vmatprep.subr.mxu0 0.0
    %619 = vmatpush1.msra.mxu0 0.0
    %620 = vmatprep.subr.mxu0 0.0
    %621 = vmatpush1.msra.mxu0 0.0
    %622 = vmatprep.subr.mxu0 0.0
    %623 = vmatpush1.msra.mxu0 0.0
    %624 = vmatprep.subr.mxu0 0.0
    %625 = vmatpush1.msra.mxu0 0.0
    %626 = vmatprep.subr.mxu0 0.0
    %627 = vmatpush1.msra.mxu0 0.0
    %628 = vmatprep.subr.mxu0 0.0
    %629 = vmatpush1.msra.mxu0 0.0
    %630 = vmatprep.subr.mxu0 0.0
    %631 = vmatpush1.msra.mxu0 0.0
    %632 = vmatprep.subr.mxu0 0.0
    %633 = vmatpush1.msra.mxu0 0.0
    %634 = vmatprep.subr.mxu0 0.0
    %635 = vmatpush1.msra.mxu0 0.0
    %636 = vmatprep.subr.mxu0 0.0
    %637 = vmatpush1.msra.mxu0 0.0
    %638 = vmatprep.subr.mxu0 0.0
    %639 = vmatpush1.msra.mxu0 0.0
    %640 = vmatprep.subr.mxu0 0.0
    %641 = vmatpush1.msra.mxu0 0.0
    %642 = vmatprep.subr.mxu0 0.0
    %643 = vmatpush1.msra.mxu0 0.0
    %644 = vmatprep.subr.mxu0 0.0
    %645 = vmatpush1.msra.mxu0 0.0
    %646 = vmatprep.subr.mxu0 0.0
    %647 = vmatpush1.msra.mxu0 0.0
    %648 = vmatprep.subr.mxu0 0.0
    %649 = vmatpush1.msra.mxu0 0.0
    %650 = vmatprep.mubr.f32.mxu0 0.0
    %651 = vmatmul.mubr.f32.gmra.mrb[0].mxu0 %v581
    %v652 = vpop.f32.mrb[0].mxu0
    %v653 = vadd.f32 0.0, %v652
    %v654 = vpop.f32.mrb[0].mxu0
    %655 = vmatprep.mubr.f32.mxu0 0.0
    %656 = vmatmul.mubr.f32.gmra.mrb[0].mxu0 %v584
    %v657 = vpop.f32.mrb[0].mxu0
    %v658 = vadd.f32 0.0, %v657
    %v659 = vpop.f32.mrb[0].mxu0
    %660 = vdwg.mxu0
    %v661 = vsub.f32 4.0, %v653
    %v662 = vsub.f32 4.0, %v658
    %s663 = scalar_lea.vmem [#allocation8], 32
    %664 = vst [vmem:[%s663] sm:$0xff] %v661
    %665 = vst [vmem:[%s663 + $0x8] sm:$0xff] %v662
    %vm666 = vcmp.eq.s32.totalorder %v55, 3
    %vm667 = vcmp.eq.s32.totalorder %v56, 3
    %vm668 = vcmp.eq.s32.totalorder %v57, 3
    %vm669 = vcmp.eq.s32.totalorder %v58, 3
    %v670 = vsel %vm666, 1, 0
    %v671 = vsel %vm667, 1, 0
    %v672 = vsel %vm668, 1, 0
    %v673 = vsel %vm669, 1, 0
    %v674 = vcvt.s32.f32 %v670
    %v675 = vcvt.s32.f32 %v671
    %v676 = vcvt.s32.f32 %v672
    %v677 = vcvt.s32.f32 %v673
    %s678 = scalar_lea.vmem [#allocation7], 96
    %v679 = vld [vmem:[%s678] sm:$0xff]
    %v680 = vld [vmem:[%s678 + $0x8] sm:$0xff]
    %v681 = vld [vmem:[%s678 + $0x10] sm:$0xff]
    %v682 = vld [vmem:[%s678 + $0x18] sm:$0xff]
    %v684 = vsel %vm75, %v674, 0
    %v687 = vsel %vm75, %v675, 0
    %v690 = vsel %vm75, %v676, 0
    %v693 = vsel %vm75, %v677, 0
    %695 = vmatprep.subr.mxu0 0.0
    %696 = vmatpush1.msra.mxu0 %v679
    %697 = vmatprep.subr.mxu0 0.0
    %698 = vmatpush1.msra.mxu0 %v680
    %699 = vmatprep.subr.mxu0 0.0
    %700 = vmatpush1.msra.mxu0 %v681
    %701 = vmatprep.subr.mxu0 0.0
    %702 = vmatpush1.msra.mxu0 %v682
    %703 = vmatprep.subr.mxu0 0.0
    %704 = vmatpush1.msra.mxu0 0.0
    %705 = vmatprep.subr.mxu0 0.0
    %706 = vmatpush1.msra.mxu0 0.0
    %707 = vmatprep.subr.mxu0 0.0
    %708 = vmatpush1.msra.mxu0 0.0
    %709 = vmatprep.subr.mxu0 0.0
    %710 = vmatpush1.msra.mxu0 0.0
    %711 = vmatprep.subr.mxu0 0.0
    %712 = vmatpush1.msra.mxu0 0.0
    %713 = vmatprep.subr.mxu0 0.0
    %714 = vmatpush1.msra.mxu0 0.0
    %715 = vmatprep.subr.mxu0 0.0
    %716 = vmatpush1.msra.mxu0 0.0
    %717 = vmatprep.subr.mxu0 0.0
    %718 = vmatpush1.msra.mxu0 0.0
    %719 = vmatprep.subr.mxu0 0.0
    %720 = vmatpush1.msra.mxu0 0.0
    %721 = vmatprep.subr.mxu0 0.0
    %722 = vmatpush1.msra.mxu0 0.0
    %723 = vmatprep.subr.mxu0 0.0
    %724 = vmatpush1.msra.mxu0 0.0
    %725 = vmatprep.subr.mxu0 0.0
    %726 = vmatpush1.msra.mxu0 0.0
    %727 = vmatprep.subr.mxu0 0.0
    %728 = vmatpush1.msra.mxu0 0.0
    %729 = vmatprep.subr.mxu0 0.0
    %730 = vmatpush1.msra.mxu0 0.0
    %731 = vmatprep.subr.mxu0 0.0
    %732 = vmatpush1.msra.mxu0 0.0
    %733 = vmatprep.subr.mxu0 0.0
    %734 = vmatpush1.msra.mxu0 0.0
    %735 = vmatprep.subr.mxu0 0.0
    %736 = vmatpush1.msra.mxu0 0.0
    %737 = vmatprep.subr.mxu0 0.0
    %738 = vmatpush1.msra.mxu0 0.0
    %739 = vmatprep.subr.mxu0 0.0
    %740 = vmatpush1.msra.mxu0 0.0
    %741 = vmatprep.subr.mxu0 0.0
    %742 = vmatpush1.msra.mxu0 0.0
    %743 = vmatprep.subr.mxu0 0.0
    %744 = vmatpush1.msra.mxu0 0.0
    %745 = vmatprep.subr.mxu0 0.0
    %746 = vmatpush1.msra.mxu0 0.0
    %747 = vmatprep.subr.mxu0 0.0
    %748 = vmatpush1.msra.mxu0 0.0
    %749 = vmatprep.subr.mxu0 0.0
    %750 = vmatpush1.msra.mxu0 0.0
    %751 = vmatprep.subr.mxu0 0.0
    %752 = vmatpush1.msra.mxu0 0.0
    %753 = vmatprep.subr.mxu0 0.0
    %754 = vmatpush1.msra.mxu0 0.0
    %755 = vmatprep.subr.mxu0 0.0
    %756 = vmatpush1.msra.mxu0 0.0
    %757 = vmatprep.subr.mxu0 0.0
    %758 = vmatpush1.msra.mxu0 0.0
    %759 = vmatprep.mubr.f32.mxu0 0.0
    %760 = vmatmul.mubr.f32.gmra.mrb[0].mxu0 %v684
    %v761 = vpop.f32.mrb[0].mxu0
    %v762 = vadd.f32 0.0, %v761
    %v763 = vpop.f32.mrb[0].mxu0
    %764 = vmatprep.mubr.f32.mxu0 0.0
    %765 = vmatmul.mubr.f32.gmra.mrb[0].mxu0 %v687
    %v766 = vpop.f32.mrb[0].mxu0
    %v767 = vadd.f32 0.0, %v766
    %v768 = vpop.f32.mrb[0].mxu0
    %769 = vmatprep.mubr.f32.mxu0 0.0
    %770 = vmatmul.mubr.f32.gmra.mrb[0].mxu0 %v690
    %v771 = vpop.f32.mrb[0].mxu0
    %v772 = vadd.f32 0.0, %v771
    %v773 = vpop.f32.mrb[0].mxu0
    %774 = vmatprep.mubr.f32.mxu0 0.0
    %775 = vmatmul.mubr.f32.gmra.mrb[0].mxu0 %v693
    %v776 = vpop.f32.mrb[0].mxu0
    %v777 = vadd.f32 0.0, %v776
    %v778 = vpop.f32.mrb[0].mxu0
    %779 = vdwg.mxu0
    %s780 = scalar_lea.vmem [#allocation5], 48
    %v781 = vld [vmem:[%s780] sm:$0xff]
    %v782 = vld [vmem:[%s780 + $0x8] sm:$0xff]
    %v784 = vsel %vm75, %v781, 0
    %v787 = vsel %vm75, %v782, 0
    %789 = vmatprep.subr.mxu0 0.0
    %790 = vmatpush1.msra.mxu0 %v762
    %791 = vmatprep.subr.mxu0 0.0
    %792 = vmatpush1.msra.mxu0 %v767
    %793 = vmatprep.subr.mxu0 0.0
    %794 = vmatpush1.msra.mxu0 %v772
    %795 = vmatprep.subr.mxu0 0.0
    %796 = vmatpush1.msra.mxu0 %v777
    %797 = vmatprep.subr.mxu0 0.0
    %798 = vmatpush1.msra.mxu0 0.0
    %799 = vmatprep.subr.mxu0 0.0
    %800 = vmatpush1.msra.mxu0 0.0
    %801 = vmatprep.subr.mxu0 0.0
    %802 = vmatpush1.msra.mxu0 0.0
    %803 = vmatprep.subr.mxu0 0.0
    %804 = vmatpush1.msra.mxu0 0.0
    %805 = vmatprep.subr.mxu0 0.0
    %806 = vmatpush1.msra.mxu0 0.0
    %807 = vmatprep.subr.mxu0 0.0
    %808 = vmatpush1.msra.mxu0 0.0
    %809 = vmatprep.subr.mxu0 0.0
    %810 = vmatpush1.msra.mxu0 0.0
    %811 = vmatprep.subr.mxu0 0.0
    %812 = vmatpush1.msra.mxu0 0.0
    %813 = vmatprep.subr.mxu0 0.0
    %814 = vmatpush1.msra.mxu0 0.0
    %815 = vmatprep.subr.mxu0 0.0
    %816 = vmatpush1.msra.mxu0 0.0
    %817 = vmatprep.subr.mxu0 0.0
    %818 = vmatpush1.msra.mxu0 0.0
    %819 = vmatprep.subr.mxu0 0.0
    %820 = vmatpush1.msra.mxu0 0.0
    %821 = vmatprep.subr.mxu0 0.0
    %822 = vmatpush1.msra.mxu0 0.0
    %823 = vmatprep.subr.mxu0 0.0
    %824 = vmatpush1.msra.mxu0 0.0
    %825 = vmatprep.subr.mxu0 0.0
    %826 = vmatpush1.msra.mxu0 0.0
    %827 = vmatprep.subr.mxu0 0.0
    %828 = vmatpush1.msra.mxu0 0.0
    %829 = vmatprep.subr.mxu0 0.0
    %830 = vmatpush1.msra.mxu0 0.0
    %831 = vmatprep.subr.mxu0 0.0
    %832 = vmatpush1.msra.mxu0 0.0
    %833 = vmatprep.subr.mxu0 0.0
    %834 = vmatpush1.msra.mxu0 0.0
    %835 = vmatprep.subr.mxu0 0.0
    %836 = vmatpush1.msra.mxu0 0.0
    %837 = vmatprep.subr.mxu0 0.0
    %838 = vmatpush1.msra.mxu0 0.0
    %839 = vmatprep.subr.mxu0 0.0
    %840 = vmatpush1.msra.mxu0 0.0
    %841 = vmatprep.subr.mxu0 0.0
    %842 = vmatpush1.msra.mxu0 0.0
    %843 = vmatprep.subr.mxu0 0.0
    %844 = vmatpush1.msra.mxu0 0.0
    %845 = vmatprep.subr.mxu0 0.0
    %846 = vmatpush1.msra.mxu0 0.0
    %847 = vmatprep.subr.mxu0 0.0
    %848 = vmatpush1.msra.mxu0 0.0
    %849 = vmatprep.subr.mxu0 0.0
    %850 = vmatpush1.msra.mxu0 0.0
    %851 = vmatprep.subr.mxu0 0.0
    %852 = vmatpush1.msra.mxu0 0.0
    %853 = vmatprep.mubr.f32.mxu0 0.0
    %854 = vmatmul.mubr.f32.gmra.mrb[0].mxu0 %v784
    %v855 = vpop.f32.mrb[0].mxu0
    %v856 = vadd.f32 0.0, %v855
    %v857 = vpop.f32.mrb[0].mxu0
    %858 = vmatprep.mubr.f32.mxu0 0.0
    %859 = vmatmul.mubr.f32.gmra.mrb[0].mxu0 %v787
    %v860 = vpop.f32.mrb[0].mxu0
    %v861 = vadd.f32 0.0, %v860
    %v862 = vpop.f32.mrb[0].mxu0
    %863 = vdwg.mxu0
    %v864 = vsub.f32 4.0, %v856
    %v865 = vsub.f32 4.0, %v861
    %s866 = scalar_lea.vmem [#allocation8], 48
    %867 = vst [vmem:[%s866] sm:$0xff] %v864
    %868 = vst [vmem:[%s866 + $0x8] sm:$0xff] %v865
    %vm869 = vcmp.eq.s32.totalorder %v55, 4
    %vm870 = vcmp.eq.s32.totalorder %v56, 4
    %vm871 = vcmp.eq.s32.totalorder %v57, 4
    %vm872 = vcmp.eq.s32.totalorder %v58, 4
    %v873 = vsel %vm869, 1, 0
    %v874 = vsel %vm870, 1, 0
    %v875 = vsel %vm871, 1, 0
    %v876 = vsel %vm872, 1, 0
    %v877 = vcvt.s32.f32 %v873
    %v878 = vcvt.s32.f32 %v874
    %v879 = vcvt.s32.f32 %v875
    %v880 = vcvt.s32.f32 %v876
    %s881 = scalar_lea.vmem [#allocation7], 128
    %v882 = vld [vmem:[%s881] sm:$0xff]
    %v883 = vld [vmem:[%s881 + $0x8] sm:$0xff]
    %v884 = vld [vmem:[%s881 + $0x10] sm:$0xff]
    %v885 = vld [vmem:[%s881 + $0x18] sm:$0xff]
    %v887 = vsel %vm75, %v877, 0
    %v890 = vsel %vm75, %v878, 0
    %v893 = vsel %vm75, %v879, 0
    %v896 = vsel %vm75, %v880, 0
    %898 = vmatprep.subr.mxu0 0.0
    %899 = vmatpush1.msra.mxu0 %v882
    %900 = vmatprep.subr.mxu0 0.0
    %901 = vmatpush1.msra.mxu0 %v883
    %902 = vmatprep.subr.mxu0 0.0
    %903 = vmatpush1.msra.mxu0 %v884
    %904 = vmatprep.subr.mxu0 0.0
    %905 = vmatpush1.msra.mxu0 %v885
    %906 = vmatprep.subr.mxu0 0.0
    %907 = vmatpush1.msra.mxu0 0.0
    %908 = vmatprep.subr.mxu0 0.0
    %909 = vmatpush1.msra.mxu0 0.0
    %910 = vmatprep.subr.mxu0 0.0
    %911 = vmatpush1.msra.mxu0 0.0
    %912 = vmatprep.subr.mxu0 0.0
    %913 = vmatpush1.msra.mxu0 0.0
    %914 = vmatprep.subr.mxu0 0.0
    %915 = vmatpush1.msra.mxu0 0.0
    %916 = vmatprep.subr.mxu0 0.0
    %917 = vmatpush1.msra.mxu0 0.0
    %918 = vmatprep.subr.mxu0 0.0
    %919 = vmatpush1.msra.mxu0 0.0
    %920 = vmatprep.subr.mxu0 0.0
    %921 = vmatpush1.msra.mxu0 0.0
    %922 = vmatprep.subr.mxu0 0.0
    %923 = vmatpush1.msra.mxu0 0.0
    %924 = vmatprep.subr.mxu0 0.0
    %925 = vmatpush1.msra.mxu0 0.0
    %926 = vmatprep.subr.mxu0 0.0
    %927 = vmatpush1.msra.mxu0 0.0
    %928 = vmatprep.subr.mxu0 0.0
    %929 = vmatpush1.msra.mxu0 0.0
    %930 = vmatprep.subr.mxu0 0.0
    %931 = vmatpush1.msra.mxu0 0.0
    %932 = vmatprep.subr.mxu0 0.0
    %933 = vmatpush1.msra.mxu0 0.0
    %934 = vmatprep.subr.mxu0 0.0
    %935 = vmatpush1.msra.mxu0 0.0
    %936 = vmatprep.subr.mxu0 0.0
    %937 = vmatpush1.msra.mxu0 0.0
    %938 = vmatprep.subr.mxu0 0.0
    %939 = vmatpush1.msra.mxu0 0.0
    %940 = vmatprep.subr.mxu0 0.0
    %941 = vmatpush1.msra.mxu0 0.0
    %942 = vmatprep.subr.mxu0 0.0
    %943 = vmatpush1.msra.mxu0 0.0
    %944 = vmatprep.subr.mxu0 0.0
    %945 = vmatpush1.msra.mxu0 0.0
    %946 = vmatprep.subr.mxu0 0.0
    %947 = vmatpush1.msra.mxu0 0.0
    %948 = vmatprep.subr.mxu0 0.0
    %949 = vmatpush1.msra.mxu0 0.0
    %950 = vmatprep.subr.mxu0 0.0
    %951 = vmatpush1.msra.mxu0 0.0
    %952 = vmatprep.subr.mxu0 0.0
    %953 = vmatpush1.msra.mxu0 0.0
    %954 = vmatprep.subr.mxu0 0.0
    %955 = vmatpush1.msra.mxu0 0.0
    %956 = vmatprep.subr.mxu0 0.0
    %957 = vmatpush1.msra.mxu0 0.0
    %958 = vmatprep.subr.mxu0 0.0
    %959 = vmatpush1.msra.mxu0 0.0
    %960 = vmatprep.subr.mxu0 0.0
    %961 = vmatpush1.msra.mxu0 0.0
    %962 = vmatprep.mubr.f32.mxu0 0.0
    %963 = vmatmul.mubr.f32.gmra.mrb[0].mxu0 %v887
    %v964 = vpop.f32.mrb[0].mxu0
    %v965 = vadd.f32 0.0, %v964
    %v966 = vpop.f32.mrb[0].mxu0
    %967 = vmatprep.mubr.f32.mxu0 0.0
    %968 = vmatmul.mubr.f32.gmra.mrb[0].mxu0 %v890
    %v969 = vpop.f32.mrb[0].mxu0
    %v970 = vadd.f32 0.0, %v969
    %v971 = vpop.f32.mrb[0].mxu0
    %972 = vmatprep.mubr.f32.mxu0 0.0
    %973 = vmatmul.mubr.f32.gmra.mrb[0].mxu0 %v893
    %v974 = vpop.f32.mrb[0].mxu0
    %v975 = vadd.f32 0.0, %v974
    %v976 = vpop.f32.mrb[0].mxu0
    %977 = vmatprep.mubr.f32.mxu0 0.0
    %978 = vmatmul.mubr.f32.gmra.mrb[0].mxu0 %v896
    %v979 = vpop.f32.mrb[0].mxu0
    %v980 = vadd.f32 0.0, %v979
    %v981 = vpop.f32.mrb[0].mxu0
    %982 = vdwg.mxu0
    %s983 = scalar_lea.vmem [#allocation5], 64
    %v984 = vld [vmem:[%s983] sm:$0xff]
    %v985 = vld [vmem:[%s983 + $0x8] sm:$0xff]
    %v987 = vsel %vm75, %v984, 0
    %v990 = vsel %vm75, %v985, 0
    %992 = vmatprep.subr.mxu0 0.0
    %993 = vmatpush1.msra.mxu0 %v965
    %994 = vmatprep.subr.mxu0 0.0
    %995 = vmatpush1.msra.mxu0 %v970
    %996 = vmatprep.subr.mxu0 0.0
    %997 = vmatpush1.msra.mxu0 %v975
    %998 = vmatprep.subr.mxu0 0.0
    %999 = vmatpush1.msra.mxu0 %v980
    %1000 = vmatprep.subr.mxu0 0.0
    %1001 = vmatpush1.msra.mxu0 0.0
    %1002 = vmatprep.subr.mxu0 0.0
    %1003 = vmatpush1.msra.mxu0 0.0
    %1004 = vmatprep.subr.mxu0 0.0
    %1005 = vmatpush1.msra.mxu0 0.0
    %1006 = vmatprep.subr.mxu0 0.0
    %1007 = vmatpush1.msra.mxu0 0.0
    %1008 = vmatprep.subr.mxu0 0.0
    %1009 = vmatpush1.msra.mxu0 0.0
    %1010 = vmatprep.subr.mxu0 0.0
    %1011 = vmatpush1.msra.mxu0 0.0
    %1012 = vmatprep.subr.mxu0 0.0
    %1013 = vmatpush1.msra.mxu0 0.0
    %1014 = vmatprep.subr.mxu0 0.0
    %1015 = vmatpush1.msra.mxu0 0.0
    %1016 = vmatprep.subr.mxu0 0.0
    %1017 = vmatpush1.msra.mxu0 0.0
    %1018 = vmatprep.subr.mxu0 0.0
    %1019 = vmatpush1.msra.mxu0 0.0
    %1020 = vmatprep.subr.mxu0 0.0
    %1021 = vmatpush1.msra.mxu0 0.0
    %1022 = vmatprep.subr.mxu0 0.0
    %1023 = vmatpush1.msra.mxu0 0.0
    %1024 = vmatprep.subr.mxu0 0.0
    %1025 = vmatpush1.msra.mxu0 0.0
    %1026 = vmatprep.subr.mxu0 0.0
    %1027 = vmatpush1.msra.mxu0 0.0
    %1028 = vmatprep.subr.mxu0 0.0
    %1029 = vmatpush1.msra.mxu0 0.0
    %1030 = vmatprep.subr.mxu0 0.0
    %1031 = vmatpush1.msra.mxu0 0.0
    %1032 = vmatprep.subr.mxu0 0.0
    %1033 = vmatpush1.msra.mxu0 0.0
    %1034 = vmatprep.subr.mxu0 0.0
    %1035 = vmatpush1.msra.mxu0 0.0
    %1036 = vmatprep.subr.mxu0 0.0
    %1037 = vmatpush1.msra.mxu0 0.0
    %1038 = vmatprep.subr.mxu0 0.0
    %1039 = vmatpush1.msra.mxu0 0.0
    %1040 = vmatprep.subr.mxu0 0.0
    %1041 = vmatpush1.msra.mxu0 0.0
    %1042 = vmatprep.subr.mxu0 0.0
    %1043 = vmatpush1.msra.mxu0 0.0
    %1044 = vmatprep.subr.mxu0 0.0
    %1045 = vmatpush1.msra.mxu0 0.0
    %1046 = vmatprep.subr.mxu0 0.0
    %1047 = vmatpush1.msra.mxu0 0.0
    %1048 = vmatprep.subr.mxu0 0.0
    %1049 = vmatpush1.msra.mxu0 0.0
    %1050 = vmatprep.subr.mxu0 0.0
    %1051 = vmatpush1.msra.mxu0 0.0
    %1052 = vmatprep.subr.mxu0 0.0
    %1053 = vmatpush1.msra.mxu0 0.0
    %1054 = vmatprep.subr.mxu0 0.0
    %1055 = vmatpush1.msra.mxu0 0.0
    %1056 = vmatprep.mubr.f32.mxu0 0.0
    %1057 = vmatmul.mubr.f32.gmra.mrb[0].mxu0 %v987
    %v1058 = vpop.f32.mrb[0].mxu0
    %v1059 = vadd.f32 0.0, %v1058
    %v1060 = vpop.f32.mrb[0].mxu0
    %1061 = vmatprep.mubr.f32.mxu0 0.0
    %1062 = vmatmul.mubr.f32.gmra.mrb[0].mxu0 %v990
    %v1063 = vpop.f32.mrb[0].mxu0
    %v1064 = vadd.f32 0.0, %v1063
    %v1065 = vpop.f32.mrb[0].mxu0
    %1066 = vdwg.mxu0
    %v1067 = vsub.f32 4.0, %v1059
    %v1068 = vsub.f32 4.0, %v1064
    %s1069 = scalar_lea.vmem [#allocation8], 64
    %1070 = vst [vmem:[%s1069] sm:$0xff] %v1067
    %1071 = vst [vmem:[%s1069 + $0x8] sm:$0xff] %v1068
    // Predicated region
    $region26: #{tpu_custom_call.1} parent=1 // pred_check
      _
    $region27: #{tpu_custom_call.1} parent=1 // pred_check_branch
      %1073 = sbr.rel (0) target = $region29
    $region28: #{tpu_custom_call.1} parent=1 // pred_region
      %s1075 = ssub.s32 1280, 1280
      %1076 = vsyncadd [#allocation4], %s1075
      %s1077 = sshll.u32 [#allocation8], 4
      %s1078 = int_to_ptr.vmem [resolvable:$true] %s1077
      %1083 = dma.vmem_to_hbm [thread:$0]  %s1078, 1280, %s3, [#allocation4], 128, 128, 8
    $region29: #{tpu_custom_call.1} parent=1 // pred_fallthru
      _
    // Predicated region
    $region30: #{tpu_custom_call.1} parent=1 // pred_check
      _
    $region31: #{tpu_custom_call.1} parent=1 // pred_check_branch
      %1085 = sbr.rel (0) target = $region33
    $region32: #{tpu_custom_call.1} parent=1 // pred_region
      %1086 = dma.done [#allocation4], 1280
    $region33: #{tpu_custom_call.1} parent=1 // pred_fallthru
      _
    %1087 = vsyncpa [#allocation3], 1
    %1088 = vsyncpa [#allocation6], 1
    %1089 = vsyncpa [#allocation4], 1

</llo_original>
